<compile_context>
chip_gen: v7x
topology: tpu7x:2x2x1
jax: 0.10.0
libtpu: 0.0.40
codegen_flags: <defaults>
</compile_context>

<pallas_src>
import functools

import jax
import jax.numpy as jnp
from jax import lax
from jax.experimental import pallas as pl
from jax.experimental.pallas import tpu as pltpu


def _round_up(x, m):
    return ((x + m - 1) // m) * m


def _cdiv(a, b):
    return (a + b - 1) // b


# ---------------------------------------------------------------------------
# Kernel: one (tm, tn) output tile of  y = x @ W + b, with W already [K, N].
# ---------------------------------------------------------------------------
def _linear_kernel(x_ref, w_ref, b_ref, o_ref, *, n_axis, tn):
    # Canonical [M, K] @ [K, N] MXU feed; cast x to the (bf16) weight dtype in
    # registers so the MXU runs at its native rate; accumulate in f32.
    acc = jnp.dot(x_ref[...].astype(w_ref.dtype), w_ref[...],
                  preferred_element_type=jnp.float32)
    # Bias stays resident as a full (1, n_pad) row; slice the lane-aligned
    # strip for this N tile instead of re-DMAing it every grid step.
    col = pl.multiple_of(pl.program_id(n_axis) * tn, 128)
    bias = b_ref[:, pl.ds(col, tn)].astype(jnp.float32)
    o_ref[...] = (acc + bias).astype(o_ref.dtype)


# ---------------------------------------------------------------------------
# One-time parameter prep (off the per-call path).
# ---------------------------------------------------------------------------
def prepare_linear_params(weight, bias, *, param_dtype=jnp.bfloat16,
                          lane_multiple=128):
    """Transpose PyTorch [out, in] weight to MXU [in, out], pad out_dim to a
    multiple of 128 (lane-dense stores), and store the weight in bf16
    (f32 accumulation happens in the kernel). Bias stays f32."""
    out_dim, in_dim = weight.shape
    n_pad = _round_up(out_dim, lane_multiple)
    w_t = weight.T
    b = bias
    if n_pad != out_dim:
        w_t = jnp.pad(w_t, ((0, 0), (0, n_pad - out_dim)))
        b = jnp.pad(b, (0, n_pad - out_dim))
    return w_t.astype(param_dtype), b.astype(jnp.float32).reshape(1, n_pad)


def _choose_tiles(batch, in_dim, n_pad, x_itemsize, w_itemsize, budget):
    """Pick (tn, tm, w_buffers) under a VMEM byte budget (K-aware)."""
    # Lane-dense N tile; 128 for small heads (so >=2 blocks are possible for
    # v7x's two TensorCores), 256 when it divides a larger head.
    tn_pref = 128 if n_pad <= 256 else (256 if n_pad % 256 == 0 else 128)
    for tn, w_bufs in ((tn_pref, 3), (tn_pref, 2), (128, 2)):
        w_tile_bytes = w_bufs * in_dim * tn * w_itemsize        # W buffers
        avail = budget - w_tile_bytes - 2 * n_pad * 4            # minus bias
        per_row = 2 * in_dim * x_itemsize + 2 * tn * 4           # x + out (2-buf)
        if avail >= per_row * 8:
            tm_cap = min(512, (avail // per_row) // 8 * 8)
            break
    else:
        # TODO(synk): add a K-tiled accumulator path (tk multiple of 128, K
        # grid axis marked "arbitrary", pl.when init/finalize) for extreme
        # input_dim where even tm=8 with untiled K exceeds the VMEM budget.
        tn, tm_cap, w_bufs = 128, 8, 2

    # Split batch into near-equal tiles <= tm_cap (avoids the ~2x padding
    # pathology of round_up(batch, tm)); last block may be ragged.
    m_tiles = _cdiv(batch, tm_cap)
    tm = min(tm_cap, _round_up(_cdiv(batch, m_tiles), 8))
    return tn, tm, w_bufs


# ---------------------------------------------------------------------------
# Forward: equivalent of PyTorch nn.Linear(input_dim, output_dim)(x).
# ---------------------------------------------------------------------------
def text_classifier_forward(x, w_p, b_p, out_dim, *, force_pallas=False):
    batch, in_dim = x.shape
    k_w, n_pad = w_p.shape
    assert k_w == in_dim and b_p.shape == (1, n_pad)

    # Tiny problems: fixed pallas_call / per-grid-step overhead dwarfs the
    # nanoseconds of compute -> let fused XLA handle it.
    if (not force_pallas
            and batch * in_dim * x.dtype.itemsize < 64 * 1024
            and n_pad * in_dim * w_p.dtype.itemsize < 64 * 1024):
        y = jnp.dot(x.astype(w_p.dtype), w_p,
                    preferred_element_type=jnp.float32) + b_p
        return y.astype(x.dtype)[:, :out_dim]

    # Chip-aware VMEM budget (~48 MiB limit on v7x / 64 MiB physical,
    # ~96 MiB on v5e/v6e / 128 MiB physical).
    try:
        vmem_cap = int(pltpu.get_tpu_info().vmem_capacity_bytes)
    except Exception:
        vmem_cap = 64 * 1024 * 1024
    vmem_limit = min(100 * 1024 * 1024, (vmem_cap * 3) // 4)
    budget = (vmem_limit * 3) // 4

    tn, tm, w_bufs = _choose_tiles(batch, in_dim, n_pad,
                                   x.dtype.itemsize, w_p.dtype.itemsize,
                                   budget)
    n_tiles = n_pad // tn
    m_tiles = _cdiv(batch, tm)

    # Guarantee >=2 blocks when the batch allows it (keeps both v7x TCs busy).
    if m_tiles * n_tiles == 1 and batch >= 16:
        tm = _round_up(_cdiv(batch, 2), 8)
        m_tiles = _cdiv(batch, tm)

    # Grid order: stream whichever operand costs less to re-fetch from HBM.
    x_bytes = batch * in_dim * x.dtype.itemsize
    w_bytes = in_dim * n_pad * w_p.dtype.itemsize
    o_bytes = batch * n_pad * x.dtype.itemsize
    cost_n_inner = x_bytes + m_tiles * w_bytes   # W re-streamed per x tile
    cost_m_inner = n_tiles * x_bytes + w_bytes   # x re-streamed per W tile
    n_inner = cost_n_inner <= cost_m_inner

    if n_inner:
        grid, n_axis = (m_tiles, n_tiles), 1
        x_map = lambda i, j: (i, 0)
        w_map = lambda i, j: (0, j)
        o_map = lambda i, j: (i, j)
        w_bufs_opt = w_bufs if (w_bufs > 2 and n_tiles >= 3) else None
    else:
        grid, n_axis = (n_tiles, m_tiles), 0
        x_map = lambda j, i: (i, 0)
        w_map = lambda j, i: (0, j)
        o_map = lambda j, i: (i, j)
        w_bufs_opt = None

    def spec(shape, index_map, bufs=None):
        if bufs is None or bufs <= 2:
            return pl.BlockSpec(shape, index_map)
        return pl.BlockSpec(shape, index_map, pipeline_mode=pl.Buffered(bufs))

    cost = pl.CostEstimate(
        flops=2 * batch * in_dim * n_pad,
        transcendentals=0,
        bytes_accessed=min(cost_n_inner, cost_m_inner) + o_bytes + 4 * n_pad)

    kernel = functools.partial(_linear_kernel, n_axis=n_axis, tn=tn)

    out_p = pl.pallas_call(
        kernel,
        out_shape=jax.ShapeDtypeStruct((batch, n_pad), x.dtype),
        grid=grid,
        in_specs=[
            spec((tm, in_dim), x_map),                     # x tile (ragged ok)
            spec((in_dim, tn), w_map, w_bufs_opt),         # W tile, [K, N]
            pl.BlockSpec((1, n_pad), lambda *_: (0, 0)),   # bias: resident
        ],
        out_specs=pl.BlockSpec((tm, tn), o_map),
        compiler_params=pltpu.CompilerParams(
            dimension_semantics=("parallel", "parallel"),
            vmem_limit_bytes=int(vmem_limit)),
        cost_estimate=cost,
    )(x, w_p, b_p)

    # Strip the lane padding on the output columns.
    return out_p[:, :out_dim]


# ---------------------------------------------------------------------------
# Demo / self-check
# ---------------------------------------------------------------------------
def _quantized_reference(x, w_p, b_p, out_dim):
    # Exact math the kernel performs (bf16-quantized operands, f32 accumulate).
    xq = x.astype(w_p.dtype).astype(jnp.float32)
    wf = w_p.astype(jnp.float32)
    y = jnp.dot(xq, wf, precision=lax.Precision.HIGHEST) + b_p
    return y[:, :out_dim]


def _run_case(key, batch, input_dim, output_dim, *, force_pallas):
    kx, kw, kb = jax.random.split(key, 3)
    # Deterministic init mimicking PyTorch nn.Linear default (+/- 1/sqrt(in)).
    bound = 1.0 / (input_dim ** 0.5)
    weight = jax.random.uniform(kw, (output_dim, input_dim), jnp.float32,
                                minval=-bound, maxval=bound)
    bias = jax.random.uniform(kb, (output_dim,), jnp.float32,
                              minval=-bound, maxval=bound)
    x = jax.random.normal(kx, (batch, input_dim), jnp.float32)

    w_p, b_p = prepare_linear_params(weight, bias)
    out = text_classifier_forward(x, w_p, b_p, output_dim,
                                  force_pallas=force_pallas)
    out = jax.block_until_ready(out)
    assert out.shape == (batch, output_dim)

    # Tight check against the exact (bf16-weight) math the kernel performs.
    ref_q = _quantized_reference(x, w_p, b_p, output_dim)
    assert jnp.allclose(out, ref_q, atol=1e-3, rtol=1e-3), "mismatch vs quantized ref"
    # Loose semantic check against the original f32 nn.Linear forward
    # (difference is only bf16 weight/activation quantization).
    ref = x @ weight.T + bias
    assert jnp.allclose(out, ref, atol=5e-2, rtol=5e-2), "mismatch vs f32 ref"
    return out


if __name__ == "__main__":
    key = jax.random.PRNGKey(0)
    k1, k2 = jax.random.split(key)

    # Small head (nn.Linear(32, 16), batch 8): force the Pallas path once,
    # then the default call which takes the tiny-problem XLA bypass.
    _run_case(k1, batch=8, input_dim=32, output_dim=16, force_pallas=True)
    _run_case(k1, batch=8, input_dim=32, output_dim=16, force_pallas=False)

    # Larger head: exercises a ragged last M block (no per-call x padding),
    # multiple lane-dense N tiles, deeper W buffering, and column stripping.
    _run_case(k2, batch=520, input_dim=768, output_dim=300, force_pallas=False)

    print("KERNEL_OK")
</pallas_src>

<mosaic_0001>
module attributes {stable_mosaic.version = 11 : i64} {
  func.func @_linear_kernel(%arg0: i32, %arg1: i32, %arg2: memref<8x32xf32, #tpu.memory_space<vmem>>, %arg3: memref<32x128xbf16, #tpu.memory_space<vmem>>, %arg4: memref<1x128xf32, #tpu.memory_space<vmem>>, %arg5: memref<8x128xf32, #tpu.memory_space<vmem>>) attributes {dimension_semantics = [#tpu.dimension_semantics<parallel>, #tpu.dimension_semantics<parallel>], iteration_bounds = array<i64: 1, 1>, scalar_prefetch = 0 : i64, scratch_operands = 0 : i64, tpu.core_type = #tpu.core_type<tc>, window_params = [{transform_indices = @transform_0, window_bounds = array<i64: 8, 32>}, {transform_indices = @transform_1, window_bounds = array<i64: 32, 128>}, {pipeline_mode = #tpu.pipeline_mode<synchronous>, transform_indices = @transform_2, window_bounds = array<i64: 1, 128>}, {transform_indices = @transform_3, window_bounds = array<i64: 8, 128>}]} {
    %c0 = arith.constant 0 : index
    %c0_0 = arith.constant 0 : index
    %0 = vector.load %arg2[%c0, %c0_0] : memref<8x32xf32, #tpu.memory_space<vmem>>, vector<8x32xf32>
    %1 = arith.truncf %0 : vector<8x32xf32> to vector<8x32xbf16>
    %c0_1 = arith.constant 0 : index
    %c0_2 = arith.constant 0 : index
    %2 = vector.load %arg3[%c0_1, %c0_2] : memref<32x128xbf16, #tpu.memory_space<vmem>>, vector<32x128xbf16>
    %cst = arith.constant dense<0.000000e+00> : vector<8x128xf32>
    %3 = tpu.matmul %1, %2, %cst {dimension_numbers = #tpu.dot_dimension_numbers<[1], [0], [0], [1], [0, 0, 1, 1], [], []>} : vector<8x32xbf16>, vector<32x128xbf16>, vector<8x128xf32> -> vector<8x128xf32>
    %c128_i32 = arith.constant 128 : i32
    %4 = arith.muli %arg1, %c128_i32 : i32
    %5 = tpu.assume_multiple %4, 128 : i32
    %c0_3 = arith.constant 0 : index
    %6 = arith.index_cast %5 : i32 to index
    %7 = vector.load %arg4[%c0_3, %6] : memref<1x128xf32, #tpu.memory_space<vmem>>, vector<1x128xf32>
    %8 = vector.broadcast %7 : vector<1x128xf32> to vector<8x128xf32>
    %9 = arith.addf %3, %8 : vector<8x128xf32>
    %c0_4 = arith.constant 0 : index
    %c0_5 = arith.constant 0 : index
    %10 = vector.load %arg5[%c0_4, %c0_5] : memref<8x128xf32, #tpu.memory_space<vmem>>, vector<8x128xf32>
    tpu.vector_store %arg5[%c0_4, %c0_5], %9 {strides = array<i32>} : memref<8x128xf32, #tpu.memory_space<vmem>>, vector<8x128xf32>,
    return
  }
  func.func @transform_0(%arg0: i32, %arg1: i32) -> (i32, i32) {
    %c0_i32 = arith.constant 0 : i32
    %c0_i32_0 = arith.constant 0 : i32
    return %arg0, %c0_i32 : i32, i32
  }
  func.func @transform_1(%arg0: i32, %arg1: i32) -> (i32, i32) {
    %c0_i32 = arith.constant 0 : i32
    %c0_i32_0 = arith.constant 0 : i32
    return %c0_i32, %arg1 : i32, i32
  }
  func.func @transform_2(%arg0: i32, %arg1: i32) -> (i32, i32) {
    %c0_i32 = arith.constant 0 : i32
    %c0_i32_0 = arith.constant 0 : i32
    %c0_i32_1 = arith.constant 0 : i32
    return %c0_i32, %c0_i32_0 : i32, i32
  }
  func.func @transform_3(%arg0: i32, %arg1: i32) -> (i32, i32) {
    %c0_i32 = arith.constant 0 : i32
    return %arg0, %arg1 : i32, i32
  }
}

</mosaic_0001>

<llo_original>
// kernel: tpu_custom_call.1
$region0: #{tpu_custom_call.1}
  #allocation0 [shape = 'u32[]', space=smem, size = 0x4, offset = 0x4, fixed_abs, tag = 'smem constant byte address 0x4 - core index']
  #allocation1 [shape = 'u32[144,128]{1,0:T(1,128)}', space=vmem, size = 0x12000, scoped, tag = 'internal scratch']
  %s0 = inlined_call_operand.hbm [shape: f32[8,32], index: 0, kind: input, shape index: {}]
  %s1 = inlined_call_operand.hbm [shape: bf16[32,128], index: 1, kind: input, shape index: {}]
  %s2 = inlined_call_operand.vmem [shape: f32[1,128], index: 2, kind: input, shape index: {}]
  %s3 = inlined_call_operand.hbm [shape: f32[8,128], index: 3, kind: output, shape index: {}]
  %s4 = sld [smem:[#allocation0]]
  $region30: #{tpu_custom_call.1} parent=0
    _
  %s6 = ssub.s32 1, %s4
  %s7 = scalar_select 0, %s6, %s4
  $region1: #{tpu_custom_call.1} parent=0
    #allocation2 [shape = 'u8[4096]{0}', space=vmem, size = 0x1000, scoped, tag = 'input window, operand 0, single buffered']
    #allocation3 [shape = 's32[1]{0}', space=sflag, size = 0x4, scoped, tag = 'scoped memory for tpu_custom_call.1']
    #allocation4 [shape = 's32[1]{0}', space=sflag, size = 0x4, scoped, tag = 'scoped memory for tpu_custom_call.1']
    #allocation5 [shape = 'u8[8192]{0}', space=vmem, size = 0x2000, scoped, tag = 'input window, operand 1, single buffered']
    #allocation6 [shape = 's32[1]{0}', space=sflag, size = 0x4, scoped, tag = 'scoped memory for tpu_custom_call.1']
    #allocation7 [shape = 'u8[4096]{0}', space=vmem, size = 0x1000, scoped, tag = 'output window, operand 0, single buffered']
    %8 = vsyncpa [#allocation3], 0
    %9 = vsyncpa [#allocation6], 0
    %10 = vsyncpa [#allocation4], 0
    // Predicated region
    $region2: #{tpu_custom_call.1} parent=1 // pred_check
      _
    $region3: #{tpu_custom_call.1} parent=1 // pred_check_branch
      %12 = sbr.rel (0) target = $region5
    $region4: #{tpu_custom_call.1} parent=1 // pred_region
      %s14 = ssub.s32 128, 128
      %15 = vsyncadd [#allocation3], %s14
      %s17 = sshll.u32 [#allocation2], 4
      %s18 = int_to_ptr.vmem [resolvable:$true] %s17
      %20 = dma.hbm_to_vmem [thread:$0]  %s0, 128, %s18, [#allocation3]
    $region5: #{tpu_custom_call.1} parent=1 // pred_fallthru
      _
    // Predicated region
    $region6: #{tpu_custom_call.1} parent=1 // pred_check
      _
    $region7: #{tpu_custom_call.1} parent=1 // pred_check_branch
      %22 = sbr.rel (0) target = $region9
    $region8: #{tpu_custom_call.1} parent=1 // pred_region
      %s24 = ssub.s32 256, 256
      %25 = vsyncadd [#allocation6], %s24
      %s26 = sshll.u32 [#allocation5], 4
      %s27 = int_to_ptr.vmem [resolvable:$true] %s26
      %32 = dma.hbm_to_vmem [thread:$0]  %s1, 256, %s27, [#allocation6], 64, 64, 4
    $region9: #{tpu_custom_call.1} parent=1 // pred_fallthru
      _
    // Predicated region
    $region10: #{tpu_custom_call.1} parent=1 // pred_check
      _
    $region11: #{tpu_custom_call.1} parent=1 // pred_check_branch
      %34 = sbr.rel (0) target = $region13
    $region12: #{tpu_custom_call.1} parent=1 // pred_region
      _
    $region13: #{tpu_custom_call.1} parent=1 // pred_fallthru
      _
    // Predicated region
    $region14: #{tpu_custom_call.1} parent=1 // pred_check
      _
    $region15: #{tpu_custom_call.1} parent=1 // pred_check_branch
      %36 = sbr.rel (0) target = $region17
    $region16: #{tpu_custom_call.1} parent=1 // pred_region
      %37 = dma.done [#allocation3], 128
    $region17: #{tpu_custom_call.1} parent=1 // pred_fallthru
      _
    // Predicated region
    $region18: #{tpu_custom_call.1} parent=1 // pred_check
      _
    $region19: #{tpu_custom_call.1} parent=1 // pred_check_branch
      %39 = sbr.rel (0) target = $region21
    $region20: #{tpu_custom_call.1} parent=1 // pred_region
      %40 = dma.done [#allocation6], 256
    $region21: #{tpu_custom_call.1} parent=1 // pred_fallthru
      _
    %v42 = vld [vmem:[#allocation2] sm:$0xff]
    %v43 = vpack.c.bf16 %v42, %v42
    %v44 = vld [vmem:[#allocation5] sm:$0xf]
    %v45 = vld [vmem:[#allocation5 + $0x4] sm:$0xf]
    %v46 = vld [vmem:[#allocation5 + $0x8] sm:$0xf]
    %v47 = vld [vmem:[#allocation5 + $0xc] sm:$0xf]
    %s48 = smul.u32 0, 128
    %s49 = sshra.s32 %s48, 7
    %s50 = sand.u32 %s48, 127
    %s51 = scalar_lea.vmem %s2, %s49
    %v52 = vld [vmem:[%s51] sm:$0x1]
    %v54 = vlaneseq
    %v55 = vshrl.u32 %v54, 7
    %v56 = vsub.s32 0, %v55
    %v57 = vrot.slane %v52, %v56
    %v63 = vunpack.c.l.b16 %v44
    %v64 = vunpack.c.l.b16 %v45
    %v65 = vunpack.c.l.b16 %v46
    %v66 = vunpack.c.l.b16 %v47
    %v67 = vpack.c.b16 %v64, %v63
    %v68 = vpack.c.b16 %v66, %v65
    %vm71 = vcmask 261120
    %v73 = vsel %vm71, %v43, 0
    %75 = vmatprep.subr.bf16.mxu0 0
    %76 = vmatpush1.bf16.msra.mxu0 %v67
    %77 = vmatprep.subr.bf16.mxu0 0
    %78 = vmatpush1.bf16.msra.mxu0 %v68
    %79 = vmatprep.subr.bf16.mxu0 0
    %80 = vmatpush1.bf16.msra.mxu0 0
    %81 = vmatprep.subr.bf16.mxu0 0
    %82 = vmatpush1.bf16.msra.mxu0 0
    %83 = vmatprep.subr.bf16.mxu0 0
    %84 = vmatpush1.bf16.msra.mxu0 0
    %85 = vmatprep.subr.bf16.mxu0 0
    %86 = vmatpush1.bf16.msra.mxu0 0
    %87 = vmatprep.subr.bf16.mxu0 0
    %88 = vmatpush1.bf16.msra.mxu0 0
    %89 = vmatprep.subr.bf16.mxu0 0
    %90 = vmatpush1.bf16.msra.mxu0 0
    %91 = vmatprep.subr.bf16.mxu0 0
    %92 = vmatpush1.bf16.msra.mxu0 0
    %93 = vmatprep.subr.bf16.mxu0 0
    %94 = vmatpush1.bf16.msra.mxu0 0
    %95 = vmatprep.subr.bf16.mxu0 0
    %96 = vmatpush1.bf16.msra.mxu0 0
    %97 = vmatprep.subr.bf16.mxu0 0
    %98 = vmatpush1.bf16.msra.mxu0 0
    %99 = vmatprep.subr.bf16.mxu0 0
    %100 = vmatpush1.bf16.msra.mxu0 0
    %101 = vmatprep.subr.bf16.mxu0 0
    %102 = vmatpush1.bf16.msra.mxu0 0
    %103 = vmatprep.subr.bf16.mxu0 0
    %104 = vmatpush1.bf16.msra.mxu0 0
    %105 = vmatprep.subr.bf16.mxu0 0
    %106 = vmatpush1.bf16.msra.mxu0 0
    %107 = vmatprep.mubr.bf16.mxu0 0
    %108 = vmatmul.mubr.bf16.gmra.mrb[0].mxu0 %v73
    %v109 = vpop.f32.mrb[0].mxu0
    %v110 = vadd.f32 %v57, %v109
    %v111 = vpop.f32.mrb[0].mxu0
    %v112 = vpop.f32.mrb[0].mxu0
    %v113 = vpop.f32.mrb[0].mxu0
    %114 = vdwg.mxu0
    %115 = vst [vmem:[#allocation7] sm:$0xff] %v110
    // Predicated region
    $region22: #{tpu_custom_call.1} parent=1 // pred_check
      _
    $region23: #{tpu_custom_call.1} parent=1 // pred_check_branch
      %117 = sbr.rel (0) target = $region25
    $region24: #{tpu_custom_call.1} parent=1 // pred_region
      %s119 = ssub.s32 128, 128
      %120 = vsyncadd [#allocation4], %s119
      %s122 = sshll.u32 [#allocation7], 4
      %s123 = int_to_ptr.vmem [resolvable:$true] %s122
      %125 = dma.vmem_to_hbm [thread:$0]  %s123, 128, %s3, [#allocation4]
    $region25: #{tpu_custom_call.1} parent=1 // pred_fallthru
      _
    // Predicated region
    $region26: #{tpu_custom_call.1} parent=1 // pred_check
      _
    $region27: #{tpu_custom_call.1} parent=1 // pred_check_branch
      %127 = sbr.rel (0) target = $region29
    $region28: #{tpu_custom_call.1} parent=1 // pred_region
      %128 = dma.done [#allocation4], 128
    $region29: #{tpu_custom_call.1} parent=1 // pred_fallthru
      _
    %129 = vsyncpa [#allocation3], 1
    %130 = vsyncpa [#allocation6], 1
    %131 = vsyncpa [#allocation4], 1

</llo_original>
